<compile_context>
chip_gen: v6e
topology: v6e:2x2x1
jax: 0.10.0
libtpu: 0.0.40
codegen_flags: <defaults>
</compile_context>

<pallas_src>
import jax
import jax.numpy as jnp
from jax.experimental import pallas as pl
from jax.experimental.pallas import tpu as pltpu

# ---- small, module-consistent shapes ----
BS, H, W, C = 2, 4, 4, 32      # batch, spatial h, spatial w, model_dim
NC = 10                        # num_classes
HW = H * W


def classification_head_kernel(x_ref, w_ref, b_ref, out_ref):
    # x_ref: (BS, HW, C)   w_ref: (C, NC)   b_ref: (1, NC)   out_ref: (BS, NC)
    x = x_ref[...]                                    # (BS, HW, C)
    pooled = jnp.sum(x, axis=1) * (1.0 / HW)          # (BS, C) mean over tokens
    logits = jnp.dot(pooled, w_ref[...],
                     preferred_element_type=jnp.float32) + b_ref[0]
    # numerically-stable log_softmax along the class axis
    m = jnp.max(logits, axis=-1, keepdims=True)
    shifted = logits - m
    lse = jnp.log(jnp.sum(jnp.exp(shifted), axis=-1, keepdims=True))
    out_ref[...] = (shifted - lse).astype(out_ref.dtype)


def classification_head(x, w, b):
    """x: (bs, h, w, c); w: (model_dim, num_classes); b: (1, num_classes)."""
    bs, h, wd, c = x.shape
    nc = w.shape[1]
    x3 = x.reshape(bs, h * wd, c)                     # free host-side reshape
    vmem = pl.BlockSpec(memory_space=pltpu.MemorySpace.VMEM)
    return pl.pallas_call(
        classification_head_kernel,
        out_shape=jax.ShapeDtypeStruct((bs, nc), jnp.float32),
        in_specs=[vmem, vmem, vmem],
        out_specs=vmem,
    )(x3, w, b)


def reference(x, w, b):
    """Pure-JAX reference of the same forward pass."""
    bs, _, _, c = x.shape
    pooled = x.reshape(bs, -1, c).mean(axis=1)
    logits = pooled @ w + b[0]
    return jax.nn.log_softmax(logits, axis=-1)


if __name__ == "__main__":
    key = jax.random.PRNGKey(0)
    kx, kw, kb = jax.random.split(key, 3)
    x = jax.random.normal(kx, (BS, H, W, C), dtype=jnp.float32)
    w = (0.02 * jax.random.normal(kw, (C, NC))).astype(jnp.float32)
    b = (0.02 * jax.random.normal(kb, (1, NC))).astype(jnp.float32)

    out = classification_head(x, w, b)
    jax.block_until_ready(out)

    ref = reference(x, w, b)
    assert out.shape == (BS, NC)
    assert jnp.allclose(out, ref, atol=1e-3, rtol=1e-3)

    print("KERNEL_OK")
</pallas_src>

<mosaic_0001>
module attributes {stable_mosaic.version = 11 : i64} {
  func.func @classification_head_kernel(%arg0: memref<2x16x32xf32, #tpu.memory_space<vmem>>, %arg1: memref<32x10xf32, #tpu.memory_space<vmem>>, %arg2: memref<1x10xf32, #tpu.memory_space<vmem>>, %arg3: memref<2x10xf32, #tpu.memory_space<vmem>>) attributes {dimension_semantics = [], scalar_prefetch = 0 : i64, scratch_operands = 0 : i64, tpu.core_type = #tpu.core_type<tc>} {
    %c0 = arith.constant 0 : index
    %c0_0 = arith.constant 0 : index
    %c0_1 = arith.constant 0 : index
    %0 = vector.load %arg0[%c0, %c0_0, %c0_1] : memref<2x16x32xf32, #tpu.memory_space<vmem>>, vector<2x16x32xf32>
    %cst = arith.constant dense<0.000000e+00> : vector<2x32xf32>
    %1 = vector.multi_reduction <add>, %0, %cst [1] : vector<2x16x32xf32> to vector<2x32xf32>
    %cst_2 = arith.constant 6.250000e-02 : f32
    %2 = vector.broadcast %cst_2 : f32 to vector<2x32xf32>
    %3 = arith.mulf %1, %2 : vector<2x32xf32>
    %c0_3 = arith.constant 0 : index
    %c0_4 = arith.constant 0 : index
    %4 = vector.load %arg1[%c0_3, %c0_4] : memref<32x10xf32, #tpu.memory_space<vmem>>, vector<32x10xf32>
    %cst_5 = arith.constant dense<0.000000e+00> : vector<2x10xf32>
    %5 = tpu.matmul %3, %4, %cst_5 {dimension_numbers = #tpu.dot_dimension_numbers<[1], [0], [0], [1], [0, 0, 1, 1], [], []>} : vector<2x32xf32>, vector<32x10xf32>, vector<2x10xf32> -> vector<2x10xf32>
    %c0_6 = arith.constant 0 : index
    %c0_7 = arith.constant 0 : index
    %6 = vector.load %arg2[%c0_6, %c0_7] : memref<1x10xf32, #tpu.memory_space<vmem>>, vector<1x10xf32>
    %7 = vector.shape_cast %6 : vector<1x10xf32> to vector<10xf32>
    %8 = vector.shape_cast %7 : vector<10xf32> to vector<1x10xf32>
    %9 = vector.broadcast %8 : vector<1x10xf32> to vector<2x10xf32>
    %10 = arith.addf %5, %9 : vector<2x10xf32>
    %cst_8 = arith.constant dense<0xFF800000> : vector<2xf32>
    %11 = vector.multi_reduction <maximumf>, %10, %cst_8 [1] : vector<2x10xf32> to vector<2xf32>
    %12 = vector.shape_cast %11 : vector<2xf32> to vector<2x1xf32>
    %13 = vector.broadcast %12 : vector<2x1xf32> to vector<2x10xf32>
    %14 = arith.subf %10, %13 : vector<2x10xf32>
    %15 = math.exp %14 : vector<2x10xf32>
    %cst_9 = arith.constant dense<0.000000e+00> : vector<2xf32>
    %16 = vector.multi_reduction <add>, %15, %cst_9 [1] : vector<2x10xf32> to vector<2xf32>
    %17 = vector.shape_cast %16 : vector<2xf32> to vector<2x1xf32>
    %18 = math.log %17 : vector<2x1xf32>
    %19 = vector.broadcast %18 : vector<2x1xf32> to vector<2x10xf32>
    %20 = arith.subf %14, %19 : vector<2x10xf32>
    %c0_10 = arith.constant 0 : index
    %c0_11 = arith.constant 0 : index
    %21 = vector.load %arg3[%c0_10, %c0_11] : memref<2x10xf32, #tpu.memory_space<vmem>>, vector<2x10xf32>
    tpu.vector_store %arg3[%c0_10, %c0_11], %20 {strides = array<i32>} : memref<2x10xf32, #tpu.memory_space<vmem>>, vector<2x10xf32>,
    return
  }
}

</mosaic_0001>

<llo_original>
// kernel: tpu_custom_call.1
$region0: #{tpu_custom_call.1}
  #allocation0 [shape = 'u32[]', space=smem, size = 0x4, offset = 0x4, fixed_abs, tag = 'smem constant byte address 0x4 - core index']
  #allocation1 [shape = 'u32[144,128]{1,0:T(1,128)}', space=vmem, size = 0x12000, scoped, tag = 'internal scratch']
  %s0 = inlined_call_operand.vmem [shape: f32[2,16,32], index: 0, kind: input, shape index: {}]
  %s1 = inlined_call_operand.vmem [shape: f32[32,10], index: 1, kind: input, shape index: {}]
  %s2 = inlined_call_operand.vmem [shape: f32[1,10], index: 2, kind: input, shape index: {}]
  %s3 = inlined_call_operand.hbm [shape: f32[2,10], index: 3, kind: output, shape index: {}]
  %s4 = sld [smem:[#allocation0]]
  $region22: #{tpu_custom_call.1} parent=0
    _
  %s6 = ssub.s32 1, %s4
  %s7 = scalar_select 0, %s6, %s4
  $region1: #{tpu_custom_call.1} parent=0
    #allocation2 [shape = 'u8[1024]{0}', space=vmem, size = 0x400, scoped, tag = 'output window, operand 0, single buffered']
    #allocation3 [shape = 's32[1]{0}', space=sflag, size = 0x4, scoped, tag = 'scoped memory for tpu_custom_call.1']
    %8 = vsyncpa [#allocation3], 0
    // Predicated region
    $region2: #{tpu_custom_call.1} parent=1 // pred_check
      _
    $region3: #{tpu_custom_call.1} parent=1 // pred_check_branch
      %10 = sbr.rel (0) target = $region5
    $region4: #{tpu_custom_call.1} parent=1 // pred_region
      _
    $region5: #{tpu_custom_call.1} parent=1 // pred_fallthru
      _
    // Predicated region
    $region6: #{tpu_custom_call.1} parent=1 // pred_check
      _
    $region7: #{tpu_custom_call.1} parent=1 // pred_check_branch
      %12 = sbr.rel (0) target = $region9
    $region8: #{tpu_custom_call.1} parent=1 // pred_region
      _
    $region9: #{tpu_custom_call.1} parent=1 // pred_fallthru
      _
    // Predicated region
    $region10: #{tpu_custom_call.1} parent=1 // pred_check
      _
    $region11: #{tpu_custom_call.1} parent=1 // pred_check_branch
      %14 = sbr.rel (0) target = $region13
    $region12: #{tpu_custom_call.1} parent=1 // pred_region
      _
    $region13: #{tpu_custom_call.1} parent=1 // pred_fallthru
      _
    %v15 = vld [vmem:[%s0] sm:$0xff]
    %v16 = vld [vmem:[%s0 + $0x8] sm:$0xff]
    %v17 = vld [vmem:[%s0 + $0x10] sm:$0xff]
    %v18 = vld [vmem:[%s0 + $0x18] sm:$0xff]
    %vm19 = vcmask 261120
    %v20 = vsel %vm19, %v15, 0.0
    %v21 = vsel %vm19, %v16, 0.0
    %v22 = vadd.f32 %v20, %v21
    %v23 = vrot.slane %v22, 4
    %v24 = vadd.f32 %v22, %v23
    %v25 = vrot.slane %v24, 2
    %v26 = vadd.f32 %v24, %v25
    %v27 = vrot.slane %v26, 1
    %v28 = vadd.f32 %v26, %v27
    %v29 = vsel %vm19, %v17, 0.0
    %v30 = vsel %vm19, %v18, 0.0
    %v31 = vadd.f32 %v29, %v30
    %v32 = vrot.slane %v31, 4
    %v33 = vadd.f32 %v31, %v32
    %v34 = vrot.slane %v33, 2
    %v35 = vadd.f32 %v33, %v34
    %v36 = vrot.slane %v35, 1
    %v37 = vadd.f32 %v35, %v36
    %v38 = vmul.f32 %v28, 0.0625
    %v39 = vmul.f32 %v37, 0.0625
    %v40 = vld [vmem:[%s1] sm:$0xff]
    %v41 = vld [vmem:[%s1 + $0x8] sm:$0xff]
    %v42 = vld [vmem:[%s1 + $0x10] sm:$0xff]
    %v43 = vld [vmem:[%s1 + $0x18] sm:$0xff]
    %v44 = vld [vmem:[%s2] sm:$0x1]
    %v46 = vlaneseq
    %v47 = vshrl.u32 %v46, 7
    %v48 = vsub.s32 0, %v47
    %v49 = vrot.slane %v44, %v48
    %vm53 = vcmask 1041409
    %v54 = vsel %vm53, %v39, %v38
    %v55 = vsel %vm19, %v54, 0
    %57 = vmatprep.subr.mxu0 0.0
    %58 = vmatpush1.msra.mxu0 0.0
    %59 = vmatprep.subr.mxu0 0.0
    %60 = vmatpush1.msra.mxu0 0.0
    %61 = vmatprep.subr.mxu0 0.0
    %62 = vmatpush1.msra.mxu0 0.0
    %63 = vmatprep.subr.mxu0 0.0
    %64 = vmatpush1.msra.mxu0 0.0
    %65 = vmatprep.subr.mxu0 0.0
    %66 = vmatpush1.msra.mxu0 0.0
    %67 = vmatprep.subr.mxu0 0.0
    %68 = vmatpush1.msra.mxu0 0.0
    %69 = vmatprep.subr.mxu0 0.0
    %70 = vmatpush1.msra.mxu0 0.0
    %71 = vmatprep.subr.mxu0 0.0
    %72 = vmatpush1.msra.mxu0 0.0
    %73 = vmatprep.subr.mxu0 0.0
    %74 = vmatpush1.msra.mxu0 0.0
    %75 = vmatprep.subr.mxu0 0.0
    %76 = vmatpush1.msra.mxu0 0.0
    %77 = vmatprep.subr.mxu0 0.0
    %78 = vmatpush1.msra.mxu0 0.0
    %79 = vmatprep.subr.mxu0 0.0
    %80 = vmatpush1.msra.mxu0 0.0
    %81 = vmatprep.subr.mxu0 0.0
    %82 = vmatpush1.msra.mxu0 %v43
    %83 = vmatprep.subr.mxu0 0.0
    %84 = vmatpush1.msra.mxu0 %v42
    %85 = vmatprep.subr.mxu0 0.0
    %86 = vmatpush1.msra.mxu0 %v41
    %87 = vmatprep.subr.mxu0 0.0
    %88 = vmatpush1.msra.mxu0 %v40
    %89 = vmatprep.subr.mxu0 0.0
    %90 = vmatpush2.msra.mxu0 0.0
    %91 = vmatprep.subr.mxu0 0.0
    %92 = vmatpush2.msra.mxu0 0.0
    %93 = vmatprep.subr.mxu0 0.0
    %94 = vmatpush2.msra.mxu0 0.0
    %95 = vmatprep.subr.mxu0 0.0
    %96 = vmatpush2.msra.mxu0 0.0
    %97 = vmatprep.subr.mxu0 0.0
    %98 = vmatpush2.msra.mxu0 0.0
    %99 = vmatprep.subr.mxu0 0.0
    %100 = vmatpush2.msra.mxu0 0.0
    %101 = vmatprep.subr.mxu0 0.0
    %102 = vmatpush2.msra.mxu0 0.0
    %103 = vmatprep.subr.mxu0 0.0
    %104 = vmatpush2.msra.mxu0 0.0
    %105 = vmatprep.subr.mxu0 0.0
    %106 = vmatpush2.msra.mxu0 0.0
    %107 = vmatprep.subr.mxu0 0.0
    %108 = vmatpush2.msra.mxu0 0.0
    %109 = vmatprep.subr.mxu0 0.0
    %110 = vmatpush2.msra.mxu0 0.0
    %111 = vmatprep.subr.mxu0 0.0
    %112 = vmatpush2.msra.mxu0 0.0
    %113 = vmatprep.subr.mxu0 0.0
    %114 = vmatpush2.msra.mxu0 0.0
    %115 = vmatprep.subr.mxu0 0.0
    %116 = vmatpush2.msra.mxu0 0.0
    %117 = vmatprep.subr.mxu0 0.0
    %118 = vmatpush2.msra.mxu0 0.0
    %119 = vmatprep.subr.mxu0 0.0
    %120 = vmatpush2.msra.mxu0 0.0
    %121 = vmatprep.mubr.f32.mxu0 0.0
    %122 = vmatmul.mubr.f32.gmra.mxu0 %v55
    %v123 = vpop.f32.mrf.mxu0
    %v124 = vadd.f32 %v49, %v123
    %v125 = vpop.f32.mrf.mxu0
    %126 = vdwg.mxu0
    %vm127 = vcmask 74752
    %v128 = vsel %vm127, %v124, -inf
    %129 = vmax.xlane.f32.xlu0 %v128
    %v130 = vpop.xlane.xlu0 %129
    %v131 = vsub.f32 %v124, %v130
    %v132 = vmul.f32 %v131, 1.442695
    %v133 = vpow.pop %v132
    %v134 = vsel %vm127, %v133, 0.0
    %135 = vadd.xlane.f32.xlu0 %v134
    %v136 = vpop.xlane.xlu0 %135
    %v137 = vlog2.pop %v136
    %v138 = vmul.f32 %v137, 0.6931472
    %v139 = vsub.f32 %v131, %v138
    %140 = vst.msk [vmem:[#allocation2] sm:$0x3] %vm127, %v139
    // Predicated region
    $region14: #{tpu_custom_call.1} parent=1 // pred_check
      _
    $region15: #{tpu_custom_call.1} parent=1 // pred_check_branch
      %142 = sbr.rel (0) target = $region17
    $region16: #{tpu_custom_call.1} parent=1 // pred_region
      %s144 = ssub.s32 32, 32
      %145 = vsyncadd [#allocation3], %s144
      %s147 = sshll.u32 [#allocation2], 4
      %s148 = int_to_ptr.vmem [resolvable:$true] %s147
      %150 = dma.vmem_to_hbm [thread:$0]  %s148, 32, %s3, [#allocation3]
    $region17: #{tpu_custom_call.1} parent=1 // pred_fallthru
      _
    // Predicated region
    $region18: #{tpu_custom_call.1} parent=1 // pred_check
      _
    $region19: #{tpu_custom_call.1} parent=1 // pred_check_branch
      %152 = sbr.rel (0) target = $region21
    $region20: #{tpu_custom_call.1} parent=1 // pred_region
      %153 = dma.done [#allocation3], 32
    $region21: #{tpu_custom_call.1} parent=1 // pred_fallthru
      _
    %154 = vsyncpa [#allocation3], 1

</llo_original>
